<compile_context>
chip_gen: v7x
topology: tpu7x:2x2x1
jax: 0.10.0
libtpu: 0.0.40
codegen_flags: <defaults>
</compile_context>

<pallas_src>
import functools
import math

import jax
import jax.numpy as jnp
from jax.experimental import pallas as pl
from jax.experimental.pallas import tpu as pltpu

_LANE = 128
_N_STATS = 6  # dot, ||x1||^2, ||x2||^2, ||x1-x2||^2, rowsum(x1-x2), kld


def _round_up(n, m):
    return ((n + m - 1) // m) * m


def _pick_td(d_pad):
    """Largest lane-aligned D tile that divides the padded feature dim."""
    for c in (4096, 2048, 1024, 512, 256, 128):
        if c <= d_pad and d_pad % c == 0:
            return c
    return d_pad  # unreachable: d_pad is a multiple of 128


def _pick_tb(b_pad):
    """Batch tile: prefer >=2 batch blocks (keeps v7x's 2nd TC busy), cap at
    32 rows so the ~8 live (TB,128) f32 slabs fit the 64-vreg file easily."""
    for c in (32, 16, 8):
        if b_pad % c == 0 and b_pad // c >= 2:
            return c
    for c in (32, 16, 8):
        if b_pad % c == 0:
            return c
    return b_pad


def _loss_reduce_kernel(xr_ref, x_ref, mu_ref, lv_ref, stats_ref):
    k = pl.program_id(1)

    @pl.when(k == 0)
    def _init():
        # Zero the resident lane-accumulator block; fold per-row KLD once per
        # batch block and store it lane-dense (broadcast across the 128 lanes).
        stats_ref[...] = jnp.zeros_like(stats_ref)
        mu = mu_ref[...].astype(jnp.float32)
        lv = lv_ref[...].astype(jnp.float32)
        kld_rows = -0.5 * jnp.sum(1.0 + lv - mu * mu - jnp.exp(lv),
                                  axis=1, keepdims=True)
        stats_ref[5, :, :] = jnp.broadcast_to(kld_rows, stats_ref.shape[1:])

    td = xr_ref.shape[1]
    nchunks = td // _LANE

    # Chunked FMA-style accumulation: live set stays at ~8 (TB,128) f32 slabs
    # (5 accumulators + 2 operand chunks + diff); no (TB,TD) f32 temporaries.
    acc_dot = acc_n1 = acc_n2 = acc_dsq = acc_sd = None
    for c in range(nchunks):
        sl = slice(c * _LANE, (c + 1) * _LANE)
        xr_c = xr_ref[:, sl].astype(jnp.float32)
        x_c = x_ref[:, sl].astype(jnp.float32)
        diff = xr_c - x_c
        if c == 0:
            acc_dot = xr_c * x_c
            acc_n1 = xr_c * xr_c
            acc_n2 = x_c * x_c
            acc_dsq = diff * diff
            acc_sd = diff
        else:
            acc_dot = acc_dot + xr_c * x_c
            acc_n1 = acc_n1 + xr_c * xr_c
            acc_n2 = acc_n2 + x_c * x_c
            acc_dsq = acc_dsq + diff * diff
            acc_sd = acc_sd + diff

    # One read-modify-write per stat into the resident output block.
    stats_ref[0, :, :] += acc_dot   # x1 . x2            (lane partials)
    stats_ref[1, :, :] += acc_n1    # ||x1||^2
    stats_ref[2, :, :] += acc_n2    # ||x2||^2
    stats_ref[3, :, :] += acc_dsq   # ||x1 - x2||^2
    stats_ref[4, :, :] += acc_sd    # rowsum(x1 - x2)


def _loss_reduce(x_recon, x, mu, logvar, *, tb=None, td=None):
    B, D = x_recon.shape
    Z = mu.shape[1]

    # Pad to lane/sublane-friendly extents; zero padding adds 0 to every stat.
    b_pad = _round_up(B, 8)
    d_pad = _round_up(D, _LANE)
    if b_pad != B or d_pad != D:
        x_recon = jnp.pad(x_recon, ((0, b_pad - B), (0, d_pad - D)))
        x = jnp.pad(x, ((0, b_pad - B), (0, d_pad - D)))
    if b_pad != B:
        mu = jnp.pad(mu, ((0, b_pad - B), (0, 0)))
        logvar = jnp.pad(logvar, ((0, b_pad - B), (0, 0)))

    if tb is None:
        tb = _pick_tb(b_pad)
    if td is None:
        td = _pick_td(d_pad)
    grid = (b_pad // tb, d_pad // td)

    stats = pl.pallas_call(
        _loss_reduce_kernel,
        out_shape=jax.ShapeDtypeStruct((_N_STATS, b_pad, _LANE), jnp.float32),
        grid=grid,
        in_specs=[
            pl.BlockSpec((tb, td), lambda i, k: (i, k)),   # x_recon tile
            pl.BlockSpec((tb, td), lambda i, k: (i, k)),   # x tile
            pl.BlockSpec((tb, Z), lambda i, k: (i, 0)),    # mu (per batch blk)
            pl.BlockSpec((tb, Z), lambda i, k: (i, 0)),    # logvar
        ],
        out_specs=pl.BlockSpec((_N_STATS, tb, _LANE), lambda i, k: (0, i, 0)),
        compiler_params=pltpu.CompilerParams(
            dimension_semantics=("parallel", "arbitrary"),
            vmem_limit_bytes=32 * 1024 * 1024,
        ),
    )(x_recon, x, mu, logvar)
    return stats[:, :B, :]


def loss_function(x_recon, x, mu, logvar, *, tb=None, td=None):
    """Pallas-backed equivalent of LossFunction.forward.

    Returns (tse_loss, kld_loss, mse_loss) as float32 scalars.
    """
    B, D = x_recon.shape
    stats = _loss_reduce(x_recon, x, mu, logvar, tb=tb, td=td)

    # Tiny O(B*128) cross-lane reductions + O(B) scalar epilogue in plain JAX.
    dot = jnp.sum(stats[0], axis=-1)
    n1sq = jnp.sum(stats[1], axis=-1)
    n2sq = jnp.sum(stats[2], axis=-1)
    dsq = jnp.sum(stats[3], axis=-1)
    sdiff = jnp.sum(stats[4], axis=-1)
    kld_rows = stats[5][:, 0]

    mse_loss = jnp.sum(dsq)                     # nn.MSELoss(reduction='sum')

    # torch PairwiseDistance(p=2, eps=1e-6): ||(x1 - x2) + eps||_2
    eps = jnp.float32(1e-6)
    euclsq = dsq + 2.0 * eps * sdiff + jnp.float32(D) * eps * eps
    eucl = jnp.sqrt(jnp.maximum(euclsq, 0.0))

    x1n = jnp.sqrt(n1sq)
    x2n = jnp.sqrt(n2sq)
    # nn.CosineSimilarity(dim=1, eps=1e-6): x1.x2 / max(||x1||*||x2||, eps)
    cos = dot / jnp.maximum(x1n * x2n, 1e-6)
    cos = jnp.clip(cos, -1.0, 1.0)              # guard arccos against rounding
    theta = jnp.deg2rad(jnp.float32(10.0)) + jnp.arccos(cos)

    triangle = jnp.abs(jnp.sin(theta)) * x1n * x2n
    sector = (eucl + jnp.abs(x1n - x2n)) ** 2 * theta
    tse_loss = jnp.sum(triangle * sector * jnp.float32(math.pi / 360.0 / 2.0))

    kld_loss = jnp.sum(kld_rows)
    return tse_loss, kld_loss, mse_loss


def _loss_function_ref(x_recon, x, mu, logvar):
    """Pure-JAX reference mirroring the PyTorch math."""
    diff = x_recon - x
    mse = jnp.sum(diff * diff)
    kld = -0.5 * jnp.sum(1.0 + logvar - mu ** 2 - jnp.exp(logvar))
    x1n = jnp.linalg.norm(x_recon, ord=2, axis=1)
    x2n = jnp.linalg.norm(x, ord=2, axis=1)
    cos = jnp.sum(x_recon * x, axis=1) / jnp.maximum(x1n * x2n, 1e-6)
    theta = jnp.deg2rad(10.0) + jnp.arccos(jnp.clip(cos, -1.0, 1.0))
    triangle = jnp.abs(jnp.sin(theta)) * x1n * x2n
    eucl = jnp.sqrt(jnp.sum((diff + 1e-6) ** 2, axis=1))
    sector = (eucl + jnp.abs(x1n - x2n)) ** 2 * theta
    tse = jnp.sum(triangle * sector * (math.pi / 360.0 / 2.0))
    return tse, kld, mse


def _make_inputs(B, D, Z, key):
    k1, k2, k3, k4 = jax.random.split(key, 4)
    x_recon = jax.random.normal(k1, (B, D), dtype=jnp.float32)
    x = jax.random.normal(k2, (B, D), dtype=jnp.float32)
    mu = jax.random.normal(k3, (B, Z), dtype=jnp.float32)
    logvar = 0.1 * jax.random.normal(k4, (B, Z), dtype=jnp.float32)
    return x_recon, x, mu, logvar


if __name__ == "__main__":
    key = jax.random.PRNGKey(0)
    fn = jax.jit(loss_function)

    # 1) Tiny case exercising the B/D padding path (D=32 -> 128, grid (1,1)).
    args = _make_inputs(8, 32, 16, jax.random.fold_in(key, 0))
    out = jax.block_until_ready(fn(*args))
    ref = _loss_function_ref(*args)
    for a, b in zip(out, ref):
        assert jnp.allclose(a, b, rtol=1e-4, atol=1e-4), (a, b)

    # 2) Multi-tile case: grid (2, 2) — k-accumulation + two batch blocks
    #    (exercises the init / accumulate / parallel paths).
    args = _make_inputs(16, 256, 16, jax.random.fold_in(key, 1))
    fn_tiled = jax.jit(functools.partial(loss_function, tb=8, td=128))
    out = jax.block_until_ready(fn_tiled(*args))
    ref = _loss_function_ref(*args)
    for a, b in zip(out, ref):
        assert jnp.allclose(a, b, rtol=1e-4, atol=1e-4), (a, b)

    # 3) Near-converged VAE (x_recon ~= x): checks that MSE / distance come
    #    from the directly-accumulated ||x1-x2||^2 (no cancellation).
    xr, x, mu, lv = _make_inputs(16, 256, 16, jax.random.fold_in(key, 2))
    xr = x + 1e-3 * xr
    tse, kld, mse = jax.block_until_ready(fn(xr, x, mu, lv))
    tse_r, kld_r, mse_r = _loss_function_ref(xr, x, mu, lv)
    assert jnp.allclose(mse, mse_r, rtol=1e-4, atol=1e-6), (mse, mse_r)
    assert jnp.allclose(kld, kld_r, rtol=1e-4), (kld, kld_r)
    # arccos(cos ~= 1) is intrinsically ill-conditioned in f32 (same in torch),
    # so only a loose check is meaningful for TSE in this regime.
    assert jnp.allclose(tse, tse_r, rtol=5e-2, atol=1e-3), (tse, tse_r)

    print("KERNEL_OK")
</pallas_src>

<mosaic_0001>
module attributes {stable_mosaic.version = 11 : i64} {
  func.func @_loss_reduce_kernel(%arg0: i32, %arg1: i32, %arg2: memref<8x128xf32, #tpu.memory_space<vmem>>, %arg3: memref<8x128xf32, #tpu.memory_space<vmem>>, %arg4: memref<8x16xf32, #tpu.memory_space<vmem>>, %arg5: memref<8x16xf32, #tpu.memory_space<vmem>>, %arg6: memref<6x8x128xf32, #tpu.memory_space<vmem>>) attributes {dimension_semantics = [#tpu.dimension_semantics<parallel>, #tpu.dimension_semantics<arbitrary>], iteration_bounds = array<i64: 1, 1>, scalar_prefetch = 0 : i64, scratch_operands = 0 : i64, tpu.core_type = #tpu.core_type<tc>, window_params = [{transform_indices = @transform_0, window_bounds = array<i64: 8, 128>}, {transform_indices = @transform_1, window_bounds = array<i64: 8, 128>}, {transform_indices = @transform_2, window_bounds = array<i64: 8, 16>}, {transform_indices = @transform_3, window_bounds = array<i64: 8, 16>}, {transform_indices = @transform_4, window_bounds = array<i64: 6, 8, 128>}]} {
    %c0_i32 = arith.constant 0 : i32
    %0 = arith.cmpi eq, %arg1, %c0_i32 : i32
    %1 = arith.extui %0 : i1 to i32
    %c0_i32_0 = arith.constant 0 : i32
    %2 = arith.cmpi ne, %1, %c0_i32_0 : i32
    scf.if %2 {
      %cst = arith.constant 0.000000e+00 : f32
      %40 = vector.broadcast %cst : f32 to vector<6x8x128xf32>
      %c0_30 = arith.constant 0 : index
      %c0_31 = arith.constant 0 : index
      %c0_32 = arith.constant 0 : index
      %41 = vector.load %arg6[%c0_30, %c0_31, %c0_32] : memref<6x8x128xf32, #tpu.memory_space<vmem>>, vector<6x8x128xf32>
      tpu.vector_store %arg6[%c0_30, %c0_31, %c0_32], %40 {strides = array<i32>} : memref<6x8x128xf32, #tpu.memory_space<vmem>>, vector<6x8x128xf32>,
      %c0_33 = arith.constant 0 : index
      %c0_34 = arith.constant 0 : index
      %42 = vector.load %arg4[%c0_33, %c0_34] : memref<8x16xf32, #tpu.memory_space<vmem>>, vector<8x16xf32>
      %c0_35 = arith.constant 0 : index
      %c0_36 = arith.constant 0 : index
      %43 = vector.load %arg5[%c0_35, %c0_36] : memref<8x16xf32, #tpu.memory_space<vmem>>, vector<8x16xf32>
      %cst_37 = arith.constant 1.000000e+00 : f32
      %44 = vector.broadcast %cst_37 : f32 to vector<8x16xf32>
      %45 = arith.addf %44, %43 : vector<8x16xf32>
      %46 = arith.mulf %42, %42 : vector<8x16xf32>
      %47 = arith.subf %45, %46 : vector<8x16xf32>
      %48 = math.exp %43 : vector<8x16xf32>
      %49 = arith.subf %47, %48 : vector<8x16xf32>
      %cst_38 = arith.constant dense<0.000000e+00> : vector<8xf32>
      %50 = vector.multi_reduction <add>, %49, %cst_38 [1] : vector<8x16xf32> to vector<8xf32>
      %51 = vector.shape_cast %50 : vector<8xf32> to vector<8x1xf32>
      %cst_39 = arith.constant -5.000000e-01 : f32
      %52 = vector.broadcast %cst_39 : f32 to vector<8x1xf32>
      %53 = arith.mulf %52, %51 : vector<8x1xf32>
      %54 = vector.shape_cast %53 : vector<8x1xf32> to vector<8x1xf32>
      %55 = vector.broadcast %54 : vector<8x1xf32> to vector<8x128xf32>
      %c5 = arith.constant 5 : index
      %c0_40 = arith.constant 0 : index
      %c0_41 = arith.constant 0 : index
      %56 = vector.load %arg6[%c5, %c0_40, %c0_41] : memref<6x8x128xf32, #tpu.memory_space<vmem>>, vector<1x8x128xf32>
      %57 = vector.shape_cast %56 : vector<1x8x128xf32> to vector<8x128xf32>
      %58 = vector.shape_cast %55 : vector<8x128xf32> to vector<1x8x128xf32>
      tpu.vector_store %arg6[%c5, %c0_40, %c0_41], %58 {strides = array<i32>} : memref<6x8x128xf32, #tpu.memory_space<vmem>>, vector<1x8x128xf32>,
    } else {
    }
    %c0 = arith.constant 0 : index
    %c0_1 = arith.constant 0 : index
    %3 = vector.load %arg2[%c0, %c0_1] : memref<8x128xf32, #tpu.memory_space<vmem>>, vector<8x128xf32>
    %c0_2 = arith.constant 0 : index
    %c0_3 = arith.constant 0 : index
    %4 = vector.load %arg3[%c0_2, %c0_3] : memref<8x128xf32, #tpu.memory_space<vmem>>, vector<8x128xf32>
    %5 = arith.subf %3, %4 : vector<8x128xf32>
    %6 = arith.mulf %3, %4 : vector<8x128xf32>
    %7 = arith.mulf %3, %3 : vector<8x128xf32>
    %8 = arith.mulf %4, %4 : vector<8x128xf32>
    %9 = arith.mulf %5, %5 : vector<8x128xf32>
    %c0_4 = arith.constant 0 : index
    %c0_5 = arith.constant 0 : index
    %c0_6 = arith.constant 0 : index
    %10 = vector.load %arg6[%c0_4, %c0_5, %c0_6] : memref<6x8x128xf32, #tpu.memory_space<vmem>>, vector<1x8x128xf32>
    %11 = vector.shape_cast %10 : vector<1x8x128xf32> to vector<8x128xf32>
    %12 = arith.addf %11, %6 : vector<8x128xf32>
    %c0_7 = arith.constant 0 : index
    %c0_8 = arith.constant 0 : index
    %c0_9 = arith.constant 0 : index
    %13 = vector.load %arg6[%c0_7, %c0_8, %c0_9] : memref<6x8x128xf32, #tpu.memory_space<vmem>>, vector<1x8x128xf32>
    %14 = vector.shape_cast %13 : vector<1x8x128xf32> to vector<8x128xf32>
    %15 = vector.shape_cast %12 : vector<8x128xf32> to vector<1x8x128xf32>
    tpu.vector_store %arg6[%c0_7, %c0_8, %c0_9], %15 {strides = array<i32>} : memref<6x8x128xf32, #tpu.memory_space<vmem>>, vector<1x8x128xf32>,
    %c1 = arith.constant 1 : index
    %c0_10 = arith.constant 0 : index
    %c0_11 = arith.constant 0 : index
    %16 = vector.load %arg6[%c1, %c0_10, %c0_11] : memref<6x8x128xf32, #tpu.memory_space<vmem>>, vector<1x8x128xf32>
    %17 = vector.shape_cast %16 : vector<1x8x128xf32> to vector<8x128xf32>
    %18 = arith.addf %17, %7 : vector<8x128xf32>
    %c1_12 = arith.constant 1 : index
    %c0_13 = arith.constant 0 : index
    %c0_14 = arith.constant 0 : index
    %19 = vector.load %arg6[%c1_12, %c0_13, %c0_14] : memref<6x8x128xf32, #tpu.memory_space<vmem>>, vector<1x8x128xf32>
    %20 = vector.shape_cast %19 : vector<1x8x128xf32> to vector<8x128xf32>
    %21 = vector.shape_cast %18 : vector<8x128xf32> to vector<1x8x128xf32>
    tpu.vector_store %arg6[%c1_12, %c0_13, %c0_14], %21 {strides = array<i32>} : memref<6x8x128xf32, #tpu.memory_space<vmem>>, vector<1x8x128xf32>,
    %c2 = arith.constant 2 : index
    %c0_15 = arith.constant 0 : index
    %c0_16 = arith.constant 0 : index
    %22 = vector.load %arg6[%c2, %c0_15, %c0_16] : memref<6x8x128xf32, #tpu.memory_space<vmem>>, vector<1x8x128xf32>
    %23 = vector.shape_cast %22 : vector<1x8x128xf32> to vector<8x128xf32>
    %24 = arith.addf %23, %8 : vector<8x128xf32>
    %c2_17 = arith.constant 2 : index
    %c0_18 = arith.constant 0 : index
    %c0_19 = arith.constant 0 : index
    %25 = vector.load %arg6[%c2_17, %c0_18, %c0_19] : memref<6x8x128xf32, #tpu.memory_space<vmem>>, vector<1x8x128xf32>
    %26 = vector.shape_cast %25 : vector<1x8x128xf32> to vector<8x128xf32>
    %27 = vector.shape_cast %24 : vector<8x128xf32> to vector<1x8x128xf32>
    tpu.vector_store %arg6[%c2_17, %c0_18, %c0_19], %27 {strides = array<i32>} : memref<6x8x128xf32, #tpu.memory_space<vmem>>, vector<1x8x128xf32>,
    %c3 = arith.constant 3 : index
    %c0_20 = arith.constant 0 : index
    %c0_21 = arith.constant 0 : index
    %28 = vector.load %arg6[%c3, %c0_20, %c0_21] : memref<6x8x128xf32, #tpu.memory_space<vmem>>, vector<1x8x128xf32>
    %29 = vector.shape_cast %28 : vector<1x8x128xf32> to vector<8x128xf32>
    %30 = arith.addf %29, %9 : vector<8x128xf32>
    %c3_22 = arith.constant 3 : index
    %c0_23 = arith.constant 0 : index
    %c0_24 = arith.constant 0 : index
    %31 = vector.load %arg6[%c3_22, %c0_23, %c0_24] : memref<6x8x128xf32, #tpu.memory_space<vmem>>, vector<1x8x128xf32>
    %32 = vector.shape_cast %31 : vector<1x8x128xf32> to vector<8x128xf32>
    %33 = vector.shape_cast %30 : vector<8x128xf32> to vector<1x8x128xf32>
    tpu.vector_store %arg6[%c3_22, %c0_23, %c0_24], %33 {strides = array<i32>} : memref<6x8x128xf32, #tpu.memory_space<vmem>>, vector<1x8x128xf32>,
    %c4 = arith.constant 4 : index
    %c0_25 = arith.constant 0 : index
    %c0_26 = arith.constant 0 : index
    %34 = vector.load %arg6[%c4, %c0_25, %c0_26] : memref<6x8x128xf32, #tpu.memory_space<vmem>>, vector<1x8x128xf32>
    %35 = vector.shape_cast %34 : vector<1x8x128xf32> to vector<8x128xf32>
    %36 = arith.addf %35, %5 : vector<8x128xf32>
    %c4_27 = arith.constant 4 : index
    %c0_28 = arith.constant 0 : index
    %c0_29 = arith.constant 0 : index
    %37 = vector.load %arg6[%c4_27, %c0_28, %c0_29] : memref<6x8x128xf32, #tpu.memory_space<vmem>>, vector<1x8x128xf32>
    %38 = vector.shape_cast %37 : vector<1x8x128xf32> to vector<8x128xf32>
    %39 = vector.shape_cast %36 : vector<8x128xf32> to vector<1x8x128xf32>
    tpu.vector_store %arg6[%c4_27, %c0_28, %c0_29], %39 {strides = array<i32>} : memref<6x8x128xf32, #tpu.memory_space<vmem>>, vector<1x8x128xf32>,
    return
  }
  func.func @transform_0(%arg0: i32, %arg1: i32) -> (i32, i32) {
    %c0_i32 = arith.constant 0 : i32
    return %arg0, %arg1 : i32, i32
  }
  func.func @transform_1(%arg0: i32, %arg1: i32) -> (i32, i32) {
    %c0_i32 = arith.constant 0 : i32
    return %arg0, %arg1 : i32, i32
  }
  func.func @transform_2(%arg0: i32, %arg1: i32) -> (i32, i32) {
    %c0_i32 = arith.constant 0 : i32
    %c0_i32_0 = arith.constant 0 : i32
    return %arg0, %c0_i32 : i32, i32
  }
  func.func @transform_3(%arg0: i32, %arg1: i32) -> (i32, i32) {
    %c0_i32 = arith.constant 0 : i32
    %c0_i32_0 = arith.constant 0 : i32
    return %arg0, %c0_i32 : i32, i32
  }
  func.func @transform_4(%arg0: i32, %arg1: i32) -> (i32, i32, i32) {
    %c0_i32 = arith.constant 0 : i32
    %c0_i32_0 = arith.constant 0 : i32
    %c0_i32_1 = arith.constant 0 : i32
    return %c0_i32, %arg0, %c0_i32_0 : i32, i32, i32
  }
}

</mosaic_0001>

<llo_original>
// kernel: loss_function.1
$region0: #{loss_function.1}
  #allocation0 [shape = 'u32[]', space=smem, size = 0x4, offset = 0x4, fixed_abs, tag = 'smem constant byte address 0x4 - core index']
  #allocation1 [shape = 'u32[144,128]{1,0:T(1,128)}', space=vmem, size = 0x12000, scoped, tag = 'internal scratch']
  %s0 = inlined_call_operand.vmem [shape: f32[8,128], index: 0, kind: input, shape index: {}]
  %s1 = inlined_call_operand.vmem [shape: f32[8,128], index: 1, kind: input, shape index: {}]
  %s2 = inlined_call_operand.vmem [shape: f32[8,16], index: 2, kind: input, shape index: {}]
  %s3 = inlined_call_operand.vmem [shape: f32[8,16], index: 3, kind: input, shape index: {}]
  %s4 = inlined_call_operand.vmem [shape: f32[6,8,128], index: 4, kind: output, shape index: {}]
  %s5 = sld [smem:[#allocation0]]
  $region30: #{loss_function.1} parent=0
    _
  %s7 = ssub.s32 1, %s5
  %s8 = scalar_select 0, %s7, %s5
  // Predicated region
  $region2: #{loss_function.1} parent=0 // pred_check
    _
  $region3: #{loss_function.1} parent=0 // pred_check_branch
    %10 = sbr.rel (0) target = $region5
  $region4: #{loss_function.1} parent=0 // pred_region
    _
  $region5: #{loss_function.1} parent=0 // pred_fallthru
    _
  // Predicated region
  $region6: #{loss_function.1} parent=0 // pred_check
    _
  $region7: #{loss_function.1} parent=0 // pred_check_branch
    %12 = sbr.rel (0) target = $region9
  $region8: #{loss_function.1} parent=0 // pred_region
    _
  $region9: #{loss_function.1} parent=0 // pred_fallthru
    _
  // Predicated region
  $region10: #{loss_function.1} parent=0 // pred_check
    _
  $region11: #{loss_function.1} parent=0 // pred_check_branch
    %14 = sbr.rel (0) target = $region13
  $region12: #{loss_function.1} parent=0 // pred_region
    _
  $region13: #{loss_function.1} parent=0 // pred_fallthru
    _
  // Predicated region
  $region14: #{loss_function.1} parent=0 // pred_check
    _
  $region15: #{loss_function.1} parent=0 // pred_check_branch
    %16 = sbr.rel (0) target = $region17
  $region16: #{loss_function.1} parent=0 // pred_region
    _
  $region17: #{loss_function.1} parent=0 // pred_fallthru
    _
  %p17 = scmp.eq.s32.totalorder 0, 0
  // Predicated region
  $region18: #{loss_function.1} parent=0 // pred_check
    %p18 = pneg %p17
  $region19: #{loss_function.1} parent=0 // pred_check_branch
    %20 = sbr.rel (%p18) target = $region21
  $region20: #{loss_function.1} parent=0 // pred_region
    %21 = vst [vmem:[%s4] sm:$0xff] 0.0
    %22 = vst [vmem:[%s4 + $0x8] sm:$0xff] 0.0
    %23 = vst [vmem:[%s4 + $0x10] sm:$0xff] 0.0
    %24 = vst [vmem:[%s4 + $0x18] sm:$0xff] 0.0
    %25 = vst [vmem:[%s4 + $0x20] sm:$0xff] 0.0
    %26 = vst [vmem:[%s4 + $0x28] sm:$0xff] 0.0
    %v27 = vld [vmem:[%s2] sm:$0xff]
    %v28 = vld [vmem:[%s3] sm:$0xff]
    %v29 = vadd.f32 %v28, 1.0
    %v30 = vmul.f32 %v27, %v27
    %v31 = vsub.f32 %v29, %v30
    %v32 = vmul.f32 %v28, 1.442695
    %v33 = vpow.pop %v32
    %v34 = vsub.f32 %v31, %v33
    %vm35 = vcmask 130048
    %v36 = vsel %vm35, %v34, 0.0
    %37 = vadd.xlane.f32.xlu0 %v36
    %v38 = vpop.xlane.xlu0 %37
    %v39 = vmul.f32 %v38, -0.5
    %s40 = scalar_lea.vmem %s4, 40
    %41 = vst [vmem:[%s40] sm:$0xff] %v39
  $region21: #{loss_function.1} parent=0 // pred_fallthru
    _
  %v42 = vld [vmem:[%s0] sm:$0xff]
  %v43 = vld [vmem:[%s1] sm:$0xff]
  %v44 = vsub.f32 %v42, %v43
  %v45 = vmul.f32 %v42, %v43
  %v46 = vmul.f32 %v42, %v42
  %v47 = vmul.f32 %v43, %v43
  %v48 = vmul.f32 %v44, %v44
  %v49 = vld [vmem:[%s4] sm:$0xff]
  %v50 = vadd.f32 %v49, %v45
  %51 = vst [vmem:[%s4] sm:$0xff] %v50
  %s52 = scalar_lea.vmem %s4, 8
  %v53 = vld [vmem:[%s52] sm:$0xff]
  %v54 = vadd.f32 %v53, %v46
  %55 = vst [vmem:[%s52] sm:$0xff] %v54
  %s56 = scalar_lea.vmem %s4, 16
  %v57 = vld [vmem:[%s56] sm:$0xff]
  %v58 = vadd.f32 %v57, %v47
  %59 = vst [vmem:[%s56] sm:$0xff] %v58
  %s60 = scalar_lea.vmem %s4, 24
  %v61 = vld [vmem:[%s60] sm:$0xff]
  %v62 = vadd.f32 %v61, %v48
  %63 = vst [vmem:[%s60] sm:$0xff] %v62
  %s64 = scalar_lea.vmem %s4, 32
  %v65 = vld [vmem:[%s64] sm:$0xff]
  %v66 = vadd.f32 %v65, %v44
  %67 = vst [vmem:[%s64] sm:$0xff] %v66
  // Predicated region
  $region22: #{loss_function.1} parent=0 // pred_check
    _
  $region23: #{loss_function.1} parent=0 // pred_check_branch
    %69 = sbr.rel (0) target = $region25
  $region24: #{loss_function.1} parent=0 // pred_region
    _
  $region25: #{loss_function.1} parent=0 // pred_fallthru
    _
  // Predicated region
  $region26: #{loss_function.1} parent=0 // pred_check
    _
  $region27: #{loss_function.1} parent=0 // pred_check_branch
    %71 = sbr.rel (0) target = $region29
  $region28: #{loss_function.1} parent=0 // pred_region
    _
  $region29: #{loss_function.1} parent=0 // pred_fallthru
    _

</llo_original>
